<compile_context>
chip_gen: v7x
topology: tpu7x:2x2x1
jax: 0.10.0
libtpu: 0.0.40
codegen_flags: <defaults>
</compile_context>

<pallas_src>
import jax
import jax.numpy as jnp
from jax.experimental import pallas as pl
from jax.experimental.pallas import tpu as pltpu


# ----------------------------------------------------------------------------
# Pallas kernel: one lane-tile of (user, candidate) rows
#   candT_ref : (D, TN)   candidate item embeddings, transposed (rows on lanes)
#   huT_ref   : (H, TN)   precomputed user@W1u + b1, transposed & repeated per candidate
#   w1iT_ref  : (H, D)    item half of W1, transposed (grid-resident)
#   w2T_ref   : (1, H)    second Linear weight as a row (grid-resident)
#   b2_ref    : (1, 1)    second Linear bias, SMEM scalar
#   out_ref   : (1, TN)   sigmoid scores, lane-dense
# ----------------------------------------------------------------------------
def _predict_layer_kernel(candT_ref, huT_ref, w1iT_ref, w2T_ref, b2_ref, out_ref):
    hT = jnp.tanh(
        jnp.dot(w1iT_ref[...], candT_ref[...], preferred_element_type=jnp.float32)
        + huT_ref[...])                                                    # (H, TN)
    s = jnp.dot(w2T_ref[...], hT, preferred_element_type=jnp.float32)      # (1, TN)
    out_ref[...] = jax.nn.sigmoid(s + b2_ref[0, 0])                        # (1, TN)


def predict_scores(user_emb, cand_emb, w1, b1, w2, b2, *, max_lane_tile=512):
    """user_emb=(B,D), cand_emb=(B,C,D) -> sigmoid MLP scores (B,C)."""
    B, C, D = cand_emb.shape
    H = w1.shape[1]
    assert w1.shape == (2 * D, H)

    # All math in f32 (matches the PyTorch module; no bf16 VPU on v5e anyway).
    f32 = jnp.float32
    user_emb = user_emb.astype(f32)
    cand_emb = cand_emb.astype(f32)
    w1 = w1.astype(f32)
    b1 = b1.astype(f32)
    w2 = w2.astype(f32)
    b2 = b2.astype(f32)

    # Lane tiling over the flattened (B*C) row axis.
    N = B * C
    Np_base = pl.cdiv(N, 128) * 128            # multiple of 128 covering N
    TN = min(max_lane_tile, Np_base)           # lane tile (multiple of 128)
    n_steps = pl.cdiv(Np_base, TN)
    Np = n_steps * TN
    pad = Np - N

    # Hoisted user half of the first Linear (+ its bias), one XLA matmul for all B.
    hu = user_emb @ w1[:D] + b1                            # (B, H)
    huT = jnp.repeat(hu.T, C, axis=1)                      # (H, B*C)  repeat_interleave
    candT = cand_emb.reshape(N, D).T                       # (D, B*C)
    if pad:
        huT = jnp.pad(huT, ((0, 0), (0, pad)))
        candT = jnp.pad(candT, ((0, 0), (0, pad)))

    w1iT = w1[D:].T                                        # (H, D)   item half, transposed
    w2T = w2.reshape(1, H)                                 # (1, H)
    b2s = b2.reshape(1, 1)                                 # SMEM scalar

    grid_spec = pltpu.PrefetchScalarGridSpec(
        num_scalar_prefetch=0,
        grid=(n_steps,),
        in_specs=[
            pl.BlockSpec((D, TN), lambda i: (0, i)),                 # candT lane-tile
            pl.BlockSpec((H, TN), lambda i: (0, i)),                 # huT  lane-tile
            pl.BlockSpec((H, D), lambda i: (0, 0)),                  # W1i^T (resident)
            pl.BlockSpec((1, H), lambda i: (0, 0)),                  # w2^T  (resident)
            pl.BlockSpec(memory_space=pltpu.MemorySpace.SMEM),       # b2 scalar
        ],
        out_specs=pl.BlockSpec((1, TN), lambda i: (0, i)),
    )

    out = pl.pallas_call(
        _predict_layer_kernel,
        out_shape=jax.ShapeDtypeStruct((1, Np), f32),
        grid_spec=grid_spec,
        compiler_params=pltpu.CompilerParams(
            dimension_semantics=("parallel",)),
    )(candT, huT, w1iT, w2T, b2s)

    return out[0, :N].reshape(B, C)


# ----------------------------------------------------------------------------
# Pure-JAX reference (mirrors the PyTorch _predict_layer exactly)
# ----------------------------------------------------------------------------
def predict_scores_ref(user_emb, cand_emb, w1, b1, w2, b2):
    B, C, D = cand_emb.shape
    seq = jnp.repeat(user_emb[:, None, :], C, axis=1)      # repeat_interleave
    x = jnp.concatenate([seq, cand_emb], axis=-1)          # (B, C, 2D)
    h = jnp.tanh(x @ w1 + b1)                              # (B, C, H)
    s = jax.nn.sigmoid(h @ w2 + b2)                        # (B, C, 1)
    return s.reshape(B, -1)


if __name__ == "__main__":
    # ---------------- synthetic config (small) ----------------
    embedding_size = 32          # D
    n_users = 50
    n_items = 100
    neg_items_num = 19           # -> C = 20 candidates per user
    B = 8
    C = neg_items_num + 1
    D = embedding_size
    H = embedding_size           # dnn_inner_size
    dnn_input_size = 2 * D

    key = jax.random.PRNGKey(0)
    k = iter(jax.random.split(key, 10))

    # Embedding tables (item table padding row 0 zeroed, as padding_idx=0).
    user_table = jax.random.normal(next(k), (n_users, D), jnp.float32) * 0.1
    item_table = jax.random.normal(next(k), (n_items, D), jnp.float32) * 0.1
    item_table = item_table.at[0].set(0.0)

    # MLP head parameters (deterministic, synthetic).
    w1 = jax.random.normal(next(k), (dnn_input_size, H), jnp.float32) * 0.1
    b1 = jax.random.normal(next(k), (H,), jnp.float32) * 0.1
    w2 = jax.random.normal(next(k), (H, 1), jnp.float32) * 0.1
    b2 = jax.random.normal(next(k), (1,), jnp.float32) * 0.1

    # Interaction: user ids, positive item ids, negative item ids.
    user_ids = jax.random.randint(next(k), (B,), 0, n_users)
    pos_items = jax.random.randint(next(k), (B, 1), 1, n_items)
    neg_items = jax.random.randint(next(k), (B, neg_items_num), 1, n_items)
    candidate_items = jnp.concatenate([pos_items, neg_items], axis=-1)   # (B, C)

    # Embedding lookups (glue, plain JAX gather).
    user_emb = jnp.take(user_table, user_ids, axis=0)                    # (B, D)
    cand_emb = jnp.take(item_table, candidate_items, axis=0)             # (B, C, D)

    scores = predict_scores(user_emb, cand_emb, w1, b1, w2, b2)
    scores = jax.block_until_ready(scores)

    ref = predict_scores_ref(user_emb, cand_emb, w1, b1, w2, b2)
    assert scores.shape == (B, C)
    assert jnp.allclose(scores, ref, atol=1e-5, rtol=1e-5), (
        f"max abs err {jnp.max(jnp.abs(scores - ref))}")

    print("KERNEL_OK")
</pallas_src>

<mosaic_0001>
module attributes {stable_mosaic.version = 11 : i64} {
  func.func @_predict_layer_kernel(%arg0: i32, %arg1: memref<32x256xf32, #tpu.memory_space<vmem>>, %arg2: memref<32x256xf32, #tpu.memory_space<vmem>>, %arg3: memref<32x32xf32, #tpu.memory_space<vmem>>, %arg4: memref<1x32xf32, #tpu.memory_space<vmem>>, %arg5: memref<1x1xf32, #tpu.memory_space<smem>>, %arg6: memref<1x256xf32, #tpu.memory_space<vmem>>) attributes {dimension_semantics = [#tpu.dimension_semantics<parallel>], iteration_bounds = array<i64: 1>, scalar_prefetch = 0 : i64, scratch_operands = 0 : i64, tpu.core_type = #tpu.core_type<tc>, window_params = [{transform_indices = @transform_0, window_bounds = array<i64: 32, 256>}, {transform_indices = @transform_1, window_bounds = array<i64: 32, 256>}, {pipeline_mode = #tpu.pipeline_mode<synchronous>, transform_indices = @transform_2, window_bounds = array<i64: 32, 32>}, {pipeline_mode = #tpu.pipeline_mode<synchronous>, transform_indices = @transform_3, window_bounds = array<i64: 1, 32>}, {transform_indices = @transform_4, window_bounds = array<i64: 1, 1>}, {transform_indices = @transform_5, window_bounds = array<i64: 1, 256>}]} {
    %c0 = arith.constant 0 : index
    %c0_0 = arith.constant 0 : index
    %0 = vector.load %arg3[%c0, %c0_0] : memref<32x32xf32, #tpu.memory_space<vmem>>, vector<32x32xf32>
    %c0_1 = arith.constant 0 : index
    %c0_2 = arith.constant 0 : index
    %1 = vector.load %arg1[%c0_1, %c0_2] : memref<32x256xf32, #tpu.memory_space<vmem>>, vector<32x256xf32>
    %cst = arith.constant dense<0.000000e+00> : vector<32x256xf32>
    %2 = tpu.matmul %0, %1, %cst {dimension_numbers = #tpu.dot_dimension_numbers<[1], [0], [0], [1], [0, 0, 1, 1], [], []>} : vector<32x32xf32>, vector<32x256xf32>, vector<32x256xf32> -> vector<32x256xf32>
    %c0_3 = arith.constant 0 : index
    %c0_4 = arith.constant 0 : index
    %3 = vector.load %arg2[%c0_3, %c0_4] : memref<32x256xf32, #tpu.memory_space<vmem>>, vector<32x256xf32>
    %4 = arith.addf %2, %3 : vector<32x256xf32>
    %5 = math.tanh %4 : vector<32x256xf32>
    %c0_5 = arith.constant 0 : index
    %c0_6 = arith.constant 0 : index
    %6 = vector.load %arg4[%c0_5, %c0_6] : memref<1x32xf32, #tpu.memory_space<vmem>>, vector<1x32xf32>
    %cst_7 = arith.constant dense<0.000000e+00> : vector<1x256xf32>
    %7 = tpu.matmul %6, %5, %cst_7 {dimension_numbers = #tpu.dot_dimension_numbers<[1], [0], [0], [1], [0, 0, 1, 1], [], []>} : vector<1x32xf32>, vector<32x256xf32>, vector<1x256xf32> -> vector<1x256xf32>
    %c0_8 = arith.constant 0 : index
    %c0_9 = arith.constant 0 : index
    %8 = memref.load %arg5[%c0_8, %c0_9] : memref<1x1xf32, #tpu.memory_space<smem>>
    %9 = vector.broadcast %8 : f32 to vector<1x256xf32>
    %10 = arith.addf %7, %9 : vector<1x256xf32>
    %11 = arith.negf %10 : vector<1x256xf32>
    %12 = math.exp %11 : vector<1x256xf32>
    %cst_10 = arith.constant 1.000000e+00 : f32
    %13 = vector.broadcast %cst_10 : f32 to vector<1x256xf32>
    %14 = arith.addf %13, %12 : vector<1x256xf32>
    %15 = arith.divf %13, %14 : vector<1x256xf32>
    %c0_11 = arith.constant 0 : index
    %c0_12 = arith.constant 0 : index
    %16 = vector.load %arg6[%c0_11, %c0_12] : memref<1x256xf32, #tpu.memory_space<vmem>>, vector<1x256xf32>
    tpu.vector_store %arg6[%c0_11, %c0_12], %15 {strides = array<i32>} : memref<1x256xf32, #tpu.memory_space<vmem>>, vector<1x256xf32>,
    return
  }
  func.func @transform_0(%arg0: i32) -> (i32, i32) {
    %c0_i32 = arith.constant 0 : i32
    %c0_i32_0 = arith.constant 0 : i32
    return %c0_i32, %arg0 : i32, i32
  }
  func.func @transform_1(%arg0: i32) -> (i32, i32) {
    %c0_i32 = arith.constant 0 : i32
    %c0_i32_0 = arith.constant 0 : i32
    return %c0_i32, %arg0 : i32, i32
  }
  func.func @transform_2(%arg0: i32) -> (i32, i32) {
    %c0_i32 = arith.constant 0 : i32
    %c0_i32_0 = arith.constant 0 : i32
    %c0_i32_1 = arith.constant 0 : i32
    return %c0_i32, %c0_i32_0 : i32, i32
  }
  func.func @transform_3(%arg0: i32) -> (i32, i32) {
    %c0_i32 = arith.constant 0 : i32
    %c0_i32_0 = arith.constant 0 : i32
    %c0_i32_1 = arith.constant 0 : i32
    return %c0_i32, %c0_i32_0 : i32, i32
  }
  func.func @transform_4(%arg0: i32) -> (i32, i32) {
    %c0_i32 = arith.constant 0 : i32
    %c0_i32_0 = arith.constant 0 : i32
    %c0_i32_1 = arith.constant 0 : i32
    return %c0_i32, %c0_i32_0 : i32, i32
  }
  func.func @transform_5(%arg0: i32) -> (i32, i32) {
    %c0_i32 = arith.constant 0 : i32
    %c0_i32_0 = arith.constant 0 : i32
    return %c0_i32, %arg0 : i32, i32
  }
}

</mosaic_0001>

<llo_original>
// kernel: tpu_custom_call.1
$region0: #{tpu_custom_call.1}
  #allocation0 [shape = 'u32[]', space=smem, size = 0x4, offset = 0x4, fixed_abs, tag = 'smem constant byte address 0x4 - core index']
  #allocation1 [shape = 'u32[144,128]{1,0:T(1,128)}', space=vmem, size = 0x12000, scoped, tag = 'internal scratch']
  #allocation2 [shape = 'f32[1,1]{1,0:T(1,128)S(6)}', space=smem, size = 0x200, scoped, tag = 'scoped memory for tpu_custom_call.1']
  %s0 = inlined_call_operand.hbm [shape: f32[32,256], index: 0, kind: input, shape index: {}]
  %s1 = inlined_call_operand.hbm [shape: f32[32,256], index: 1, kind: input, shape index: {}]
  %s2 = inlined_call_operand.hbm [shape: f32[32,32], index: 2, kind: input, shape index: {}]
  %s3 = inlined_call_operand.vmem [shape: f32[1,32], index: 3, kind: input, shape index: {}]
  %s4 = inlined_call_operand.<no memory space> [shape: f32[1,1], index: 4, kind: input, shape index: {}]
  %s5 = inlined_call_operand.hbm [shape: f32[1,256], index: 5, kind: output, shape index: {}]
  %s6 = sld [smem:[#allocation0]]
  $region42: #{tpu_custom_call.1} parent=0
    _
  %s8 = ssub.s32 1, %s6
  %s9 = scalar_select 0, %s8, %s6
  %10 = sst [smem:[#allocation2]] %s4
  $region1: #{tpu_custom_call.1} parent=0
    #allocation3 [shape = 'u8[32768]{0}', space=vmem, size = 0x8000, scoped, tag = 'input window, operand 0, single buffered']
    #allocation4 [shape = 's32[1]{0}', space=sflag, size = 0x4, scoped, tag = 'scoped memory for tpu_custom_call.1']
    #allocation5 [shape = 's32[1]{0}', space=sflag, size = 0x4, scoped, tag = 'scoped memory for tpu_custom_call.1']
    #allocation6 [shape = 'u8[32768]{0}', space=vmem, size = 0x8000, scoped, tag = 'input window, operand 1, single buffered']
    #allocation7 [shape = 's32[1]{0}', space=sflag, size = 0x4, scoped, tag = 'scoped memory for tpu_custom_call.1']
    #allocation8 [shape = 'u8[16384]{0}', space=vmem, size = 0x4000, scoped, tag = 'input window, operand 2, single buffered']
    #allocation9 [shape = 'u8[1024]{0}', space=vmem, size = 0x400, scoped, tag = 'output window, operand 0, single buffered']
    %11 = vsyncpa [#allocation4], 0
    %12 = vsyncpa [#allocation7], 0
    %13 = vsyncpa [#allocation5], 0
    // Predicated region
    $region2: #{tpu_custom_call.1} parent=1 // pred_check
      _
    $region3: #{tpu_custom_call.1} parent=1 // pred_check_branch
      %15 = sbr.rel (0) target = $region5
    $region4: #{tpu_custom_call.1} parent=1 // pred_region
      %s17 = ssub.s32 1024, 1024
      %18 = vsyncadd [#allocation4], %s17
      %s19 = sshll.u32 [#allocation3], 4
      %s20 = int_to_ptr.vmem [resolvable:$true] %s19
      %25 = dma.hbm_to_vmem [thread:$0]  %s0, 1024, %s20, [#allocation4], 256, 256, 16
    $region5: #{tpu_custom_call.1} parent=1 // pred_fallthru
      _
    // Predicated region
    $region6: #{tpu_custom_call.1} parent=1 // pred_check
      _
    $region7: #{tpu_custom_call.1} parent=1 // pred_check_branch
      %27 = sbr.rel (0) target = $region9
    $region8: #{tpu_custom_call.1} parent=1 // pred_region
      %s29 = ssub.s32 1024, 1024
      %30 = vsyncadd [#allocation7], %s29
      %s31 = sshll.u32 [#allocation6], 4
      %s32 = int_to_ptr.vmem [resolvable:$true] %s31
      %37 = dma.hbm_to_vmem [thread:$0]  %s1, 1024, %s32, [#allocation7], 256, 256, 16
    $region9: #{tpu_custom_call.1} parent=1 // pred_fallthru
      _
    // Predicated region
    $region10: #{tpu_custom_call.1} parent=1 // pred_check
      _
    $region11: #{tpu_custom_call.1} parent=1 // pred_check_branch
      %39 = sbr.rel (0) target = $region13
    $region12: #{tpu_custom_call.1} parent=1 // pred_region
      %s41 = ssub.s32 512, 512
      %42 = vsyncadd [#allocation7], %s41
      %s43 = sshll.u32 [#allocation8], 4
      %s44 = int_to_ptr.vmem [resolvable:$true] %s43
      %49 = dma.hbm_to_vmem [thread:$0]  %s2, 512, %s44, [#allocation7], 128, 128, 8
    $region13: #{tpu_custom_call.1} parent=1 // pred_fallthru
      _
    // Predicated region
    $region14: #{tpu_custom_call.1} parent=1 // pred_check
      _
    $region15: #{tpu_custom_call.1} parent=1 // pred_check_branch
      %51 = sbr.rel (0) target = $region17
    $region16: #{tpu_custom_call.1} parent=1 // pred_region
      _
    $region17: #{tpu_custom_call.1} parent=1 // pred_fallthru
      _
    // Predicated region
    $region18: #{tpu_custom_call.1} parent=1 // pred_check
      _
    $region19: #{tpu_custom_call.1} parent=1 // pred_check_branch
      %53 = sbr.rel (0) target = $region21
    $region20: #{tpu_custom_call.1} parent=1 // pred_region
      _
    $region21: #{tpu_custom_call.1} parent=1 // pred_fallthru
      _
    // Predicated region
    $region22: #{tpu_custom_call.1} parent=1 // pred_check
      _
    $region23: #{tpu_custom_call.1} parent=1 // pred_check_branch
      %55 = sbr.rel (0) target = $region25
    $region24: #{tpu_custom_call.1} parent=1 // pred_region
      %56 = dma.done [#allocation4], 1024
    $region25: #{tpu_custom_call.1} parent=1 // pred_fallthru
      _
    // Predicated region
    $region26: #{tpu_custom_call.1} parent=1 // pred_check
      _
    $region27: #{tpu_custom_call.1} parent=1 // pred_check_branch
      %58 = sbr.rel (0) target = $region29
    $region28: #{tpu_custom_call.1} parent=1 // pred_region
      %59 = dma.done [#allocation7], 1024
    $region29: #{tpu_custom_call.1} parent=1 // pred_fallthru
      _
    // Predicated region
    $region30: #{tpu_custom_call.1} parent=1 // pred_check
      _
    $region31: #{tpu_custom_call.1} parent=1 // pred_check_branch
      %61 = sbr.rel (0) target = $region33
    $region32: #{tpu_custom_call.1} parent=1 // pred_region
      %62 = dma.done [#allocation7], 512
    $region33: #{tpu_custom_call.1} parent=1 // pred_fallthru
      _
    %v63 = vld [vmem:[#allocation8] sm:$0xff]
    %v64 = vld [vmem:[#allocation8 + $0x8] sm:$0xff]
    %v65 = vld [vmem:[#allocation8 + $0x10] sm:$0xff]
    %v66 = vld [vmem:[#allocation8 + $0x18] sm:$0xff]
    %v67 = vld [vmem:[#allocation3] sm:$0xff]
    %v68 = vld [vmem:[#allocation3 + $0x8] sm:$0xff]
    %v69 = vld [vmem:[#allocation3 + $0x10] sm:$0xff]
    %v70 = vld [vmem:[#allocation3 + $0x18] sm:$0xff]
    %v71 = vld [vmem:[#allocation3 + $0x20] sm:$0xff]
    %v72 = vld [vmem:[#allocation3 + $0x28] sm:$0xff]
    %v73 = vld [vmem:[#allocation3 + $0x30] sm:$0xff]
    %v74 = vld [vmem:[#allocation3 + $0x38] sm:$0xff]
    %v75 = vld [vmem:[#allocation6] sm:$0xff]
    %v76 = vld [vmem:[#allocation6 + $0x8] sm:$0xff]
    %v77 = vld [vmem:[#allocation6 + $0x10] sm:$0xff]
    %v78 = vld [vmem:[#allocation6 + $0x18] sm:$0xff]
    %v79 = vld [vmem:[#allocation6 + $0x20] sm:$0xff]
    %v80 = vld [vmem:[#allocation6 + $0x28] sm:$0xff]
    %v81 = vld [vmem:[#allocation6 + $0x30] sm:$0xff]
    %v82 = vld [vmem:[#allocation6 + $0x38] sm:$0xff]
    %vm83 = vcmask 261120
    %v85 = vsel %vm83, %v63, 0
    %v88 = vsel %vm83, %v64, 0
    %v91 = vsel %vm83, %v65, 0
    %v94 = vsel %vm83, %v66, 0
    %96 = vmatprep.subr.mxu0 %v68
    %97 = vmatpush1.msra.mxu0 %v67
    %98 = vmatprep.subr.mxu0 %v70
    %99 = vmatpush1.msra.mxu0 %v69
    %100 = vmatprep.subr.mxu0 %v72
    %101 = vmatpush1.msra.mxu0 %v71
    %102 = vmatprep.subr.mxu0 %v74
    %103 = vmatpush1.msra.mxu0 %v73
    %104 = vmatprep.subr.mxu0 0.0
    %105 = vmatpush1.msra.mxu0 0.0
    %106 = vmatprep.subr.mxu0 0.0
    %107 = vmatpush1.msra.mxu0 0.0
    %108 = vmatprep.subr.mxu0 0.0
    %109 = vmatpush1.msra.mxu0 0.0
    %110 = vmatprep.subr.mxu0 0.0
    %111 = vmatpush1.msra.mxu0 0.0
    %112 = vmatprep.subr.mxu0 0.0
    %113 = vmatpush1.msra.mxu0 0.0
    %114 = vmatprep.subr.mxu0 0.0
    %115 = vmatpush1.msra.mxu0 0.0
    %116 = vmatprep.subr.mxu0 0.0
    %117 = vmatpush1.msra.mxu0 0.0
    %118 = vmatprep.subr.mxu0 0.0
    %119 = vmatpush1.msra.mxu0 0.0
    %120 = vmatprep.subr.mxu0 0.0
    %121 = vmatpush1.msra.mxu0 0.0
    %122 = vmatprep.subr.mxu0 0.0
    %123 = vmatpush1.msra.mxu0 0.0
    %124 = vmatprep.subr.mxu0 0.0
    %125 = vmatpush1.msra.mxu0 0.0
    %126 = vmatprep.subr.mxu0 0.0
    %127 = vmatpush1.msra.mxu0 0.0
    %128 = vmatprep.subr.mxu0 0.0
    %129 = vmatpush1.msra.mxu0 0.0
    %130 = vmatprep.subr.mxu0 0.0
    %131 = vmatpush1.msra.mxu0 0.0
    %132 = vmatprep.subr.mxu0 0.0
    %133 = vmatpush1.msra.mxu0 0.0
    %134 = vmatprep.subr.mxu0 0.0
    %135 = vmatpush1.msra.mxu0 0.0
    %136 = vmatprep.subr.mxu0 0.0
    %137 = vmatpush1.msra.mxu0 0.0
    %138 = vmatprep.subr.mxu0 0.0
    %139 = vmatpush1.msra.mxu0 0.0
    %140 = vmatprep.subr.mxu0 0.0
    %141 = vmatpush1.msra.mxu0 0.0
    %142 = vmatprep.subr.mxu0 0.0
    %143 = vmatpush1.msra.mxu0 0.0
    %144 = vmatprep.subr.mxu0 0.0
    %145 = vmatpush1.msra.mxu0 0.0
    %146 = vmatprep.subr.mxu0 0.0
    %147 = vmatpush1.msra.mxu0 0.0
    %148 = vmatprep.subr.mxu0 0.0
    %149 = vmatpush1.msra.mxu0 0.0
    %150 = vmatprep.subr.mxu0 0.0
    %151 = vmatpush1.msra.mxu0 0.0
    %152 = vmatprep.subr.mxu0 0.0
    %153 = vmatpush1.msra.mxu0 0.0
    %154 = vmatprep.subr.mxu0 0.0
    %155 = vmatpush1.msra.mxu0 0.0
    %156 = vmatprep.subr.mxu0 0.0
    %157 = vmatpush1.msra.mxu0 0.0
    %158 = vmatprep.subr.mxu0 0.0
    %159 = vmatpush1.msra.mxu0 0.0
    %160 = vmatprep.mubr.f32.mxu0 0.0
    %161 = vmatmul.mubr.f32.gmra.mrb[0].mxu0 %v85
    %v162 = vpop.f32.mrb[0].mxu0
    %v163 = vadd.f32 %v75, %v162
    %v164 = vpop.f32.mrb[0].mxu0
    %v165 = vadd.f32 %v76, %v164
    %166 = vmatprep.mubr.f32.mxu0 0.0
    %167 = vmatmul.mubr.f32.gmra.mrb[0].mxu0 %v88
    %v168 = vpop.f32.mrb[0].mxu0
    %v169 = vadd.f32 %v77, %v168
    %v170 = vpop.f32.mrb[0].mxu0
    %v171 = vadd.f32 %v78, %v170
    %172 = vmatprep.mubr.f32.mxu0 0.0
    %173 = vmatmul.mubr.f32.gmra.mrb[0].mxu0 %v91
    %v174 = vpop.f32.mrb[0].mxu0
    %v175 = vadd.f32 %v79, %v174
    %v176 = vpop.f32.mrb[0].mxu0
    %v177 = vadd.f32 %v80, %v176
    %178 = vmatprep.mubr.f32.mxu0 0.0
    %179 = vmatmul.mubr.f32.gmra.mrb[0].mxu0 %v94
    %v180 = vpop.f32.mrb[0].mxu0
    %v181 = vadd.f32 %v81, %v180
    %v182 = vpop.f32.mrb[0].mxu0
    %v183 = vadd.f32 %v82, %v182
    %184 = vdwg.mxu0
    %v185 = vtanh.pop %v163
    %v186 = vtanh.pop %v165
    %v187 = vtanh.pop %v169
    %v188 = vtanh.pop %v171
    %v189 = vtanh.pop %v175
    %v190 = vtanh.pop %v177
    %v191 = vtanh.pop %v181
    %v192 = vtanh.pop %v183
    %v193 = vld [vmem:[%s3] sm:$0x1]
    %s194 = sld [smem:[#allocation2]]
    %v195 = vstv %s194
    %v197 = vsel %vm83, %v193, 0
    %199 = vmatprep.subr.mxu0 %v186
    %200 = vmatpush1.msra.mxu0 %v185
    %201 = vmatprep.subr.mxu0 %v188
    %202 = vmatpush1.msra.mxu0 %v187
    %203 = vmatprep.subr.mxu0 %v190
    %204 = vmatpush1.msra.mxu0 %v189
    %205 = vmatprep.subr.mxu0 %v192
    %206 = vmatpush1.msra.mxu0 %v191
    %207 = vmatprep.subr.mxu0 0.0
    %208 = vmatpush1.msra.mxu0 0.0
    %209 = vmatprep.subr.mxu0 0.0
    %210 = vmatpush1.msra.mxu0 0.0
    %211 = vmatprep.subr.mxu0 0.0
    %212 = vmatpush1.msra.mxu0 0.0
    %213 = vmatprep.subr.mxu0 0.0
    %214 = vmatpush1.msra.mxu0 0.0
    %215 = vmatprep.subr.mxu0 0.0
    %216 = vmatpush1.msra.mxu0 0.0
    %217 = vmatprep.subr.mxu0 0.0
    %218 = vmatpush1.msra.mxu0 0.0
    %219 = vmatprep.subr.mxu0 0.0
    %220 = vmatpush1.msra.mxu0 0.0
    %221 = vmatprep.subr.mxu0 0.0
    %222 = vmatpush1.msra.mxu0 0.0
    %223 = vmatprep.subr.mxu0 0.0
    %224 = vmatpush1.msra.mxu0 0.0
    %225 = vmatprep.subr.mxu0 0.0
    %226 = vmatpush1.msra.mxu0 0.0
    %227 = vmatprep.subr.mxu0 0.0
    %228 = vmatpush1.msra.mxu0 0.0
    %229 = vmatprep.subr.mxu0 0.0
    %230 = vmatpush1.msra.mxu0 0.0
    %231 = vmatprep.subr.mxu0 0.0
    %232 = vmatpush1.msra.mxu0 0.0
    %233 = vmatprep.subr.mxu0 0.0
    %234 = vmatpush1.msra.mxu0 0.0
    %235 = vmatprep.subr.mxu0 0.0
    %236 = vmatpush1.msra.mxu0 0.0
    %237 = vmatprep.subr.mxu0 0.0
    %238 = vmatpush1.msra.mxu0 0.0
    %239 = vmatprep.subr.mxu0 0.0
    %240 = vmatpush1.msra.mxu0 0.0
    %241 = vmatprep.subr.mxu0 0.0
    %242 = vmatpush1.msra.mxu0 0.0
    %243 = vmatprep.subr.mxu0 0.0
    %244 = vmatpush1.msra.mxu0 0.0
    %245 = vmatprep.subr.mxu0 0.0
    %246 = vmatpush1.msra.mxu0 0.0
    %247 = vmatprep.subr.mxu0 0.0
    %248 = vmatpush1.msra.mxu0 0.0
    %249 = vmatprep.subr.mxu0 0.0
    %250 = vmatpush1.msra.mxu0 0.0
    %251 = vmatprep.subr.mxu0 0.0
    %252 = vmatpush1.msra.mxu0 0.0
    %253 = vmatprep.subr.mxu0 0.0
    %254 = vmatpush1.msra.mxu0 0.0
    %255 = vmatprep.subr.mxu0 0.0
    %256 = vmatpush1.msra.mxu0 0.0
    %257 = vmatprep.subr.mxu0 0.0
    %258 = vmatpush1.msra.mxu0 0.0
    %259 = vmatprep.subr.mxu0 0.0
    %260 = vmatpush1.msra.mxu0 0.0
    %261 = vmatprep.subr.mxu0 0.0
    %262 = vmatpush1.msra.mxu0 0.0
    %263 = vmatprep.mubr.f32.mxu0 0.0
    %264 = vmatmul.mubr.f32.gmra.mrb[0].mxu0 %v197
    %v265 = vpop.f32.mrb[0].mxu0
    %v266 = vadd.f32 %v195, %v265
    %v267 = vpop.f32.mrb[0].mxu0
    %v268 = vadd.f32 %v195, %v267
    %269 = vdwg.mxu0
    %v270 = vxor.u32 %v266, 2147483648
    %v271 = vxor.u32 %v268, 2147483648
    %v272 = vmul.f32 %v270, 1.442695
    %v273 = vpow.pop %v272
    %v274 = vmul.f32 %v271, 1.442695
    %v275 = vpow.pop %v274
    %v276 = vadd.f32 %v273, 1.0
    %v277 = vadd.f32 %v275, 1.0
    %v278 = vrcp.pop %v276
    %v279 = vmul.f32 1.0, %v278
    %v280 = vrcp.pop %v277
    %v281 = vmul.f32 1.0, %v280
    %v284 = vcombine.low %v279, %v281
    %v286 = vunpack.c.l.s4 1966171168
    %v287 = vunpack.c.0.s8 %v286
    %v288 = vlaneseq
    %v289 = vshrl.u32 %v288, 7
    %v290 = vsub.s32 %v287, %v289
    %v291 = vrot.slane %v284, %v290
    %v293 = vunpack.c.l.s4 1966171168
    %v294 = vunpack.c.0.s8 %v293
    %v295 = vlaneseq
    %v296 = vshrl.u32 %v295, 7
    %v297 = vsub.s32 %v294, %v296
    %v298 = vrot.slane %v291, %v297
    %v300 = vlaneseq
    %vm301 = vcmp.ge.s32.totalorder %v300, 0
    %vm302 = vcmp.lt.s32.totalorder %v300, 256
    %vm303 = vmand %vm301, %vm302
    %304 = vst.msk [vmem:[#allocation9] sm:$0x3] %vm303, %v298
    // Predicated region
    $region34: #{tpu_custom_call.1} parent=1 // pred_check
      _
    $region35: #{tpu_custom_call.1} parent=1 // pred_check_branch
      %306 = sbr.rel (0) target = $region37
    $region36: #{tpu_custom_call.1} parent=1 // pred_region
      %s308 = ssub.s32 32, 32
      %309 = vsyncadd [#allocation5], %s308
      %s311 = sshll.u32 [#allocation9], 4
      %s312 = int_to_ptr.vmem [resolvable:$true] %s311
      %314 = dma.vmem_to_hbm [thread:$0]  %s312, 32, %s5, [#allocation5]
    $region37: #{tpu_custom_call.1} parent=1 // pred_fallthru
      _
    // Predicated region
    $region38: #{tpu_custom_call.1} parent=1 // pred_check
      _
    $region39: #{tpu_custom_call.1} parent=1 // pred_check_branch
      %316 = sbr.rel (0) target = $region41
    $region40: #{tpu_custom_call.1} parent=1 // pred_region
      %317 = dma.done [#allocation5], 32
    $region41: #{tpu_custom_call.1} parent=1 // pred_fallthru
      _
    %318 = vsyncpa [#allocation4], 1
    %319 = vsyncpa [#allocation7], 1
    %320 = vsyncpa [#allocation5], 1

</llo_original>
